<compile_context>
chip_gen: v7x
topology: tpu7x:2x2x1
jax: 0.10.0
libtpu: 0.0.40
codegen_flags: <defaults>
</compile_context>

<pallas_src>
import functools
import math

import jax
import jax.numpy as jnp
from jax.experimental import pallas as pl
from jax.experimental.pallas import tpu as pltpu


def _round_up(x, m):
    return ((x + m - 1) // m) * m


def _vmem_budget_bytes():
    """75% of physical VMEM; falls back to 64 MiB (v7x per-TC size) -> 48 MiB."""
    cap = 64 * 1024 * 1024
    try:
        cap = int(getattr(pltpu.get_tpu_info(), "vmem_capacity_bytes", cap))
    except Exception:
        pass
    return (cap * 3) // 4


# ---------------------------------------------------------------------------
# Fused weight-normalised conv block: conv0(k, pad) -> ReLU -> conv1(k=1),
# channels-last layout (B, L, C). Both weights resident in VMEM; the hidden
# activation never leaves the kernel.
# ---------------------------------------------------------------------------

def _fused_conv_kernel(x_ref, h_ref, w0_ref, b0_ref, w1_ref, b1_ref, o_ref, *, k, tl):
    # x_ref : (1, TL, C_in)     main input tile (padded L rows [t*TL, (t+1)*TL))
    # h_ref : (1, 8, C_in)      aligned 8-row halo block starting at row (t+1)*TL
    # w0_ref: (K, C_in, C_hid)  weight-normed conv0 weight (tap-major)
    # b0_ref: (1, C_hid)        conv0 bias (f32)
    # w1_ref: (C_hid, C_out)    weight-normed pointwise conv1 weight
    # b1_ref: (1, C_out)        conv1 bias (f32)
    # o_ref : (1, TL, C_out)    lane-dense output tile (f32)
    #
    # Both window pieces are 8-row multiples -> aligned sublane concat even in bf16
    # (no packed relayout, no f32 round trip).
    window = jnp.concatenate([x_ref[0], h_ref[0]], axis=0)            # (TL+8, C_in)
    c_hid = w0_ref.shape[2]
    acc = jnp.zeros((tl, c_hid), jnp.float32)
    # K accumulating MXU matmuls; the tap shift happens on the f32 product side
    # (robust sublane slices), so the compute-dtype input is only ever fed straight
    # to the MXU.
    for j in range(k):                                                # static unroll
        pj = jnp.dot(window, w0_ref[j], preferred_element_type=jnp.float32)
        acc = acc + jax.lax.slice_in_dim(pj, j, j + tl, axis=0)       # (TL, C_hid)
    hid = jnp.maximum(acc + b0_ref[...], 0.0)                         # bias + ReLU, f32
    # Fused pointwise conv1 (single down-cast for the second MXU matmul).
    y = jnp.dot(hid.astype(w1_ref.dtype), w1_ref[...],
                preferred_element_type=jnp.float32)                   # (TL, C_out)
    o_ref[0] = (y + b1_ref[...]).astype(o_ref.dtype)


def _weight_norm(v, g):
    """PyTorch weight_norm (dim=0): w = g * v / ||v||, norm over (C_in, K)."""
    v = v.astype(jnp.float32)
    norm = jnp.sqrt(jnp.sum(v * v, axis=(1, 2), keepdims=True))
    return g.reshape(-1, 1, 1).astype(jnp.float32) * v / norm


def fused_wn_conv_block(x, v0, g0, b0, v1, g1, b1, *, padding,
                        compute_dtype=jnp.bfloat16, tl=512):
    """conv1x1( relu( wn_conv1d_K(x) ) ) on channels-last x.

    x  : (B, L, C_in) float32
    v0 : (C_hid, C_in, K),  g0: (C_hid,), b0: (C_hid,)
    v1 : (C_out, C_hid, 1), g1: (C_out,), b1: (C_out,)
    returns (B, L_out, C_out) float32, L_out = L + 2*padding - K + 1
    """
    B, L, C_in = x.shape
    C_hid, _, K = v0.shape
    C_out, _, K1 = v1.shape
    assert K1 == 1, "second conv must be pointwise (k=1)"
    if K - 1 > 8:
        raise NotImplementedError("halo block covers at most K-1 <= 8 taps")
    L_out = L + 2 * padding - K + 1

    w0_t = jnp.transpose(_weight_norm(v0, g0), (2, 1, 0)).astype(compute_dtype)  # (K, C_in, C_hid)
    b0_row = b0.reshape(1, C_hid).astype(jnp.float32)
    w1_t = jnp.transpose(_weight_norm(v1, g1)[:, :, 0], (1, 0)).astype(compute_dtype)  # (C_hid, C_out)
    b1_row = b1.reshape(1, C_out).astype(jnp.float32)

    tl = max(8, (tl // 8) * 8)                            # force sublane alignment
    tl_eff = min(tl, _round_up(max(L_out, 8), 8))
    assert tl_eff % 8 == 0
    nt = -(-L_out // tl_eff)
    l_pad_out = nt * tl_eff
    halo_blk = tl_eff // 8

    # Single pad provides the conv left zero-padding AND tile/halo alignment; the
    # bf16 cast fuses into the same copy.
    # TODO(synk): folding the left-pad handling into the kernel (masked first tile)
    # would remove this one extra HBM activation pass entirely.
    right = l_pad_out + 8 - padding - L
    assert right >= 0
    x_p = jnp.pad(x.astype(compute_dtype), ((0, 0), (padding, right), (0, 0)))

    # Explicit VMEM limit from the actual per-step footprint, capped at 75% of
    # physical VMEM (v7x 64 MiB safe; v5e/v6e get the larger budget automatically).
    csz = jnp.dtype(compute_dtype).itemsize
    per_step = (
        2 * tl_eff * C_in * csz            # x tile, double-buffered
        + 2 * 8 * C_in * csz               # halo block, double-buffered
        + 2 * tl_eff * C_out * 4           # out tile (f32), double-buffered
        + K * C_in * C_hid * csz           # conv0 weight (resident)
        + C_hid * C_out * csz              # conv1 weight (resident)
        + (C_hid + C_out) * 4              # biases
        + (tl_eff + 8) * C_hid * 4         # per-tap product temp (f32)
        + 2 * tl_eff * C_hid * 4           # accumulator + hidden activation (f32)
    )
    vmem_limit = int(min(max(3 * per_step, 16 * 1024 * 1024), _vmem_budget_bytes()))

    out = pl.pallas_call(
        functools.partial(_fused_conv_kernel, k=K, tl=tl_eff),
        out_shape=jax.ShapeDtypeStruct((B, l_pad_out, C_out), jnp.float32),
        grid_spec=pltpu.PrefetchScalarGridSpec(
            num_scalar_prefetch=0,
            grid=(B, nt),
            in_specs=[
                pl.BlockSpec((1, tl_eff, C_in), lambda b, t: (b, t, 0)),
                pl.BlockSpec((1, 8, C_in), lambda b, t: (b, (t + 1) * halo_blk, 0)),
                pl.BlockSpec((K, C_in, C_hid), lambda b, t: (0, 0, 0)),
                pl.BlockSpec((1, C_hid), lambda b, t: (0, 0)),
                pl.BlockSpec((C_hid, C_out), lambda b, t: (0, 0)),
                pl.BlockSpec((1, C_out), lambda b, t: (0, 0)),
            ],
            out_specs=pl.BlockSpec((1, tl_eff, C_out), lambda b, t: (b, t, 0)),
        ),
        compiler_params=pltpu.CompilerParams(
            dimension_semantics=("parallel", "parallel"),
            vmem_limit_bytes=vmem_limit,
        ),
    )(x_p, x_p, w0_t, b0_row, w1_t, b1_row)

    return out[:, :L_out, :]


# ---------------------------------------------------------------------------
# Self-attention core: softmax(Q K^T) V over groups of heads.
# q is pre-scaled by 1/sqrt(Dh) in the wrapper; q/k/v arrive in bf16.
# ---------------------------------------------------------------------------

def _mha_core_kernel(q_ref, k_ref, v_ref, o_ref):
    q = q_ref[...]                                       # (G, S, Dh) bf16 (pre-scaled)
    k = k_ref[...]
    v = v_ref[...]
    s = jnp.einsum("gqd,gkd->gqk", q, k, preferred_element_type=jnp.float32)
    m = jnp.max(s, axis=-1, keepdims=True)
    p = jnp.exp(s - m)
    denom = jnp.sum(p, axis=-1, keepdims=True)
    o = jnp.einsum("gqk,gkd->gqd", p.astype(v.dtype), v,
                   preferred_element_type=jnp.float32)
    # Fold the softmax normalisation into the (S, Dh) output; approx reciprocal
    # rides the EUP slot instead of dividing the (S, S) prob matrix.
    o_ref[...] = (o * pl.reciprocal(denom, approx=True)).astype(o_ref.dtype)


def mha_core(q, k, v, *, compute_dtype=jnp.bfloat16, heads_per_step=8):
    """q, k, v: (B*H, S, Dh) float32 (q pre-scaled) -> (B*H, S, Dh) float32."""
    BH, S, Dh = q.shape
    # Cap the head group so the dense (G, S, S) f32 score/prob temporaries stay
    # within ~24 MiB of VMEM.
    # TODO(synk): flash-style KV tiling (online softmax) for long sequences; the
    # dense S x S per head will not fit v7x's 64 MiB VMEM once S reaches thousands.
    g_cap = max(1, (24 * 1024 * 1024) // max(1, 12 * S * S))
    G = max(1, min(heads_per_step, BH, g_cap))
    pad = (-BH) % G

    qc = q.astype(compute_dtype)
    kc = k.astype(compute_dtype)
    vc = v.astype(compute_dtype)
    if pad:
        qc = jnp.pad(qc, ((0, pad), (0, 0), (0, 0)))
        kc = jnp.pad(kc, ((0, pad), (0, 0), (0, 0)))
        vc = jnp.pad(vc, ((0, pad), (0, 0), (0, 0)))
    BHp = BH + pad

    per_step = (2 * 3 * G * S * Dh * 2          # q/k/v tiles, double-buffered (bf16)
                + 2 * G * S * Dh * 4            # output tile, double-buffered (f32)
                + 3 * G * S * S * 4             # scores / exp / probs (f32)
                + 2 * G * S * Dh * 4)           # o temp + headroom (f32)
    vmem_limit = int(min(max(3 * per_step, 16 * 1024 * 1024), _vmem_budget_bytes()))

    out = pl.pallas_call(
        _mha_core_kernel,
        out_shape=jax.ShapeDtypeStruct((BHp, S, Dh), jnp.float32),
        grid_spec=pltpu.PrefetchScalarGridSpec(
            num_scalar_prefetch=0,
            grid=(BHp // G,),
            in_specs=[pl.BlockSpec((G, S, Dh), lambda i: (i, 0, 0))] * 3,
            out_specs=pl.BlockSpec((G, S, Dh), lambda i: (i, 0, 0)),
        ),
        compiler_params=pltpu.CompilerParams(
            dimension_semantics=("parallel",),
            vmem_limit_bytes=vmem_limit,
        ),
    )(qc, kc, vc)
    return out[:BH]


# ---------------------------------------------------------------------------
# Full Convertor forward (eval mode) + pure-JAX float32 reference.
# ---------------------------------------------------------------------------

def convertor_forward(src, params, *, compute_dtype=jnp.bfloat16, conv_tile=512):
    """src: (S, B, d_model) float32 -> (S, B, d_model) float32 (eval mode)."""
    S, B, E = src.shape
    H = params["nhead"]
    Dh = E // H
    scale = 1.0 / math.sqrt(Dh)

    # --- self-attention (PyTorch MultiheadAttention semantics, eval mode) ---
    # TODO(synk): attn_mask / key_padding_mask are not supported (always None here).
    qkv = jnp.einsum("sbe,fe->sbf", src, params["in_proj_weight"]) + params["in_proj_bias"]
    q, k, v = jnp.split(qkv, 3, axis=-1)
    q = q * scale                                  # fold softmax scale into q (f32)

    def to_heads(t):
        return t.reshape(S, B, H, Dh).transpose(1, 2, 0, 3).reshape(B * H, S, Dh)

    o = mha_core(to_heads(q), to_heads(k), to_heads(v),
                 compute_dtype=compute_dtype)                          # (B*H, S, Dh)
    o = o.reshape(B, H, S, Dh).transpose(2, 0, 1, 3).reshape(S, B, E)
    src2 = jnp.einsum("sbe,fe->sbf", o, params["out_proj_weight"]) + params["out_proj_bias"]
    src = src + src2                               # dropout1: identity in eval mode

    # --- fused conv block: conv0(k=5, p=2) -> ReLU -> conv1(k=1), channels-last ---
    x = jnp.transpose(src, (1, 0, 2))                                  # (B, S, E)
    y = fused_wn_conv_block(
        x,
        params["conv0_v"], params["conv0_g"], params["conv0_b"],
        params["conv1_v"], params["conv1_g"], params["conv1_b"],
        padding=2, compute_dtype=compute_dtype, tl=conv_tile)          # (B, S, E)
    src = src + jnp.transpose(y, (1, 0, 2))        # dropout2: identity in eval mode
    return src


def convertor_reference(src, params):
    """Pure-JAX float32 reference (lax.conv for the conv block)."""
    S, B, E = src.shape
    H = params["nhead"]
    Dh = E // H
    qkv = jnp.einsum("sbe,fe->sbf", src, params["in_proj_weight"]) + params["in_proj_bias"]
    q, k, v = jnp.split(qkv, 3, axis=-1)
    q = q.reshape(S, B, H, Dh).transpose(1, 2, 0, 3)
    k = k.reshape(S, B, H, Dh).transpose(1, 2, 0, 3)
    v = v.reshape(S, B, H, Dh).transpose(1, 2, 0, 3)
    scores = jnp.einsum("bhqd,bhkd->bhqk", q, k) / jnp.sqrt(jnp.float32(Dh))
    attn = jax.nn.softmax(scores, axis=-1)
    o = jnp.einsum("bhqk,bhkd->bhqd", attn, v).transpose(2, 0, 1, 3).reshape(S, B, E)
    src2 = jnp.einsum("sbe,fe->sbf", o, params["out_proj_weight"]) + params["out_proj_bias"]
    src = src + src2

    def wn(v_, g_):
        n = jnp.sqrt(jnp.sum(v_ * v_, axis=(1, 2), keepdims=True))
        return g_.reshape(-1, 1, 1) * v_ / n

    x = jnp.transpose(src, (1, 2, 0))                                  # (B, E, S)
    h = jax.lax.conv_general_dilated(x, wn(params["conv0_v"], params["conv0_g"]),
                                     (1,), [(2, 2)],
                                     dimension_numbers=("NCH", "OIH", "NCH"))
    h = jnp.maximum(h + params["conv0_b"].reshape(1, -1, 1), 0.0)
    y = jax.lax.conv_general_dilated(h, wn(params["conv1_v"], params["conv1_g"]),
                                     (1,), [(0, 0)],
                                     dimension_numbers=("NCH", "OIH", "NCH"))
    y = y + params["conv1_b"].reshape(1, -1, 1)
    return src + jnp.transpose(y, (2, 0, 1))


if __name__ == "__main__":
    # Small shapes consistent with the module: seq=8, batch=2, d_model=16, nhead=2, d_hid=32.
    S, B, E, H, D_HID = 8, 2, 16, 2, 32
    key = jax.random.PRNGKey(0)
    ks = jax.random.split(key, 11)
    src = jax.random.normal(ks[0], (S, B, E), jnp.float32)
    params = {
        "nhead": H,
        "in_proj_weight": 0.1 * jax.random.normal(ks[1], (3 * E, E), jnp.float32),
        "in_proj_bias": 0.01 * jax.random.normal(ks[2], (3 * E,), jnp.float32),
        "out_proj_weight": 0.1 * jax.random.normal(ks[3], (E, E), jnp.float32),
        "out_proj_bias": 0.01 * jax.random.normal(ks[4], (E,), jnp.float32),
        # init_weights: conv weights ~ N(0, 0.01); weight_norm stores (v, g) pairs.
        "conv0_v": 0.01 * jax.random.normal(ks[5], (D_HID, E, 5), jnp.float32),
        "conv0_g": 1.0 + 0.1 * jax.random.normal(ks[6], (D_HID,), jnp.float32),
        "conv0_b": 0.01 * jax.random.normal(ks[7], (D_HID,), jnp.float32),
        "conv1_v": 0.01 * jax.random.normal(ks[8], (E, D_HID, 1), jnp.float32),
        "conv1_g": 1.0 + 0.1 * jax.random.normal(ks[9], (E,), jnp.float32),
        "conv1_b": 0.01 * jax.random.normal(ks[10], (E,), jnp.float32),
    }

    out = convertor_forward(src, params)
    out = jax.block_until_ready(out)

    ref = convertor_reference(src, params)
    assert out.shape == (S, B, E)
    # bf16 MXU operands (f32 accumulate) in both attention and the fused conv block
    # -> loose-ish tolerance vs the pure-f32 reference.
    err = float(jnp.max(jnp.abs(out - ref)))
    assert jnp.allclose(out, ref, atol=6e-2, rtol=6e-2), err

    print("KERNEL_OK")
</pallas_src>

<mosaic_0001>
module attributes {stable_mosaic.version = 11 : i64} {
  func.func @_mha_core_kernel(%arg0: i32, %arg1: memref<4x8x8xbf16, #tpu.memory_space<vmem>>, %arg2: memref<4x8x8xbf16, #tpu.memory_space<vmem>>, %arg3: memref<4x8x8xbf16, #tpu.memory_space<vmem>>, %arg4: memref<4x8x8xf32, #tpu.memory_space<vmem>>) attributes {dimension_semantics = [#tpu.dimension_semantics<parallel>], iteration_bounds = array<i64: 1>, scalar_prefetch = 0 : i64, scratch_operands = 0 : i64, tpu.core_type = #tpu.core_type<tc>, window_params = [{transform_indices = @transform_0, window_bounds = array<i64: 4, 8, 8>}, {transform_indices = @transform_1, window_bounds = array<i64: 4, 8, 8>}, {transform_indices = @transform_2, window_bounds = array<i64: 4, 8, 8>}, {transform_indices = @transform_3, window_bounds = array<i64: 4, 8, 8>}]} {
    %c0 = arith.constant 0 : index
    %c0_0 = arith.constant 0 : index
    %c0_1 = arith.constant 0 : index
    %0 = vector.load %arg1[%c0, %c0_0, %c0_1] : memref<4x8x8xbf16, #tpu.memory_space<vmem>>, vector<4x8x8xbf16>
    %c0_2 = arith.constant 0 : index
    %c0_3 = arith.constant 0 : index
    %c0_4 = arith.constant 0 : index
    %1 = vector.load %arg2[%c0_2, %c0_3, %c0_4] : memref<4x8x8xbf16, #tpu.memory_space<vmem>>, vector<4x8x8xbf16>
    %c0_5 = arith.constant 0 : index
    %c0_6 = arith.constant 0 : index
    %c0_7 = arith.constant 0 : index
    %2 = vector.load %arg3[%c0_5, %c0_6, %c0_7] : memref<4x8x8xbf16, #tpu.memory_space<vmem>>, vector<4x8x8xbf16>
    "tpu.trace_start"() <{level = 10 : i32, message = "gqd,gkd->gqk"}> : () -> ()
    %cst = arith.constant dense<0.000000e+00> : vector<4x8x8xf32>
    %3 = tpu.matmul %0, %1, %cst {dimension_numbers = #tpu.dot_dimension_numbers<[2], [2], [1], [1], [0, 0, 0, 1, 1, 1], [0], [0]>} : vector<4x8x8xbf16>, vector<4x8x8xbf16>, vector<4x8x8xf32> -> vector<4x8x8xf32>
    "tpu.trace_stop"() : () -> ()
    %cst_8 = arith.constant dense<0xFF800000> : vector<4x8xf32>
    %4 = vector.multi_reduction <maximumf>, %3, %cst_8 [2] : vector<4x8x8xf32> to vector<4x8xf32>
    %5 = vector.shape_cast %4 : vector<4x8xf32> to vector<4x8x1xf32>
    %6 = vector.broadcast %5 : vector<4x8x1xf32> to vector<4x8x8xf32>
    %7 = arith.subf %3, %6 : vector<4x8x8xf32>
    %8 = math.exp %7 : vector<4x8x8xf32>
    %cst_9 = arith.constant dense<0.000000e+00> : vector<4x8xf32>
    %9 = vector.multi_reduction <add>, %8, %cst_9 [2] : vector<4x8x8xf32> to vector<4x8xf32>
    %10 = vector.shape_cast %9 : vector<4x8xf32> to vector<4x8x1xf32>
    %11 = arith.truncf %8 : vector<4x8x8xf32> to vector<4x8x8xbf16>
    "tpu.trace_start"() <{level = 10 : i32, message = "gqk,gkd->gqd"}> : () -> ()
    %cst_10 = arith.constant dense<0.000000e+00> : vector<4x8x8xf32>
    %12 = tpu.matmul %11, %2, %cst_10 {dimension_numbers = #tpu.dot_dimension_numbers<[2], [1], [1], [2], [0, 0, 0, 1, 1, 2], [0], [0]>} : vector<4x8x8xbf16>, vector<4x8x8xbf16>, vector<4x8x8xf32> -> vector<4x8x8xf32>
    "tpu.trace_stop"() : () -> ()
    %13 = tpu.reciprocal %10 {approx = true} : vector<4x8x1xf32> -> vector<4x8x1xf32>
    %14 = vector.broadcast %13 : vector<4x8x1xf32> to vector<4x8x8xf32>
    %15 = arith.mulf %12, %14 : vector<4x8x8xf32>
    %c0_11 = arith.constant 0 : index
    %c0_12 = arith.constant 0 : index
    %c0_13 = arith.constant 0 : index
    %16 = vector.load %arg4[%c0_11, %c0_12, %c0_13] : memref<4x8x8xf32, #tpu.memory_space<vmem>>, vector<4x8x8xf32>
    tpu.vector_store %arg4[%c0_11, %c0_12, %c0_13], %15 {strides = array<i32>} : memref<4x8x8xf32, #tpu.memory_space<vmem>>, vector<4x8x8xf32>,
    return
  }
  func.func @transform_0(%arg0: i32) -> (i32, i32, i32) {
    %c0_i32 = arith.constant 0 : i32
    %c0_i32_0 = arith.constant 0 : i32
    %c0_i32_1 = arith.constant 0 : i32
    return %arg0, %c0_i32, %c0_i32_0 : i32, i32, i32
  }
  func.func @transform_1(%arg0: i32) -> (i32, i32, i32) {
    %c0_i32 = arith.constant 0 : i32
    %c0_i32_0 = arith.constant 0 : i32
    %c0_i32_1 = arith.constant 0 : i32
    return %arg0, %c0_i32, %c0_i32_0 : i32, i32, i32
  }
  func.func @transform_2(%arg0: i32) -> (i32, i32, i32) {
    %c0_i32 = arith.constant 0 : i32
    %c0_i32_0 = arith.constant 0 : i32
    %c0_i32_1 = arith.constant 0 : i32
    return %arg0, %c0_i32, %c0_i32_0 : i32, i32, i32
  }
  func.func @transform_3(%arg0: i32) -> (i32, i32, i32) {
    %c0_i32 = arith.constant 0 : i32
    %c0_i32_0 = arith.constant 0 : i32
    %c0_i32_1 = arith.constant 0 : i32
    return %arg0, %c0_i32, %c0_i32_0 : i32, i32, i32
  }
}

</mosaic_0001>

<llo_original>
// kernel: tpu_custom_call.1
$region0: #{tpu_custom_call.1}
  #allocation0 [shape = 'u32[]', space=smem, size = 0x4, offset = 0x4, fixed_abs, tag = 'smem constant byte address 0x4 - core index']
  #allocation1 [shape = 'u32[144,128]{1,0:T(1,128)}', space=vmem, size = 0x12000, scoped, tag = 'internal scratch']
  %s0 = inlined_call_operand.hbm [shape: bf16[4,8,8], index: 0, kind: input, shape index: {}]
  %s1 = inlined_call_operand.hbm [shape: bf16[4,8,8], index: 1, kind: input, shape index: {}]
  %s2 = inlined_call_operand.hbm [shape: bf16[4,8,8], index: 2, kind: input, shape index: {}]
  %s3 = inlined_call_operand.hbm [shape: f32[4,8,8], index: 3, kind: output, shape index: {}]
  %s4 = sld [smem:[#allocation0]]
  $region34: #{tpu_custom_call.1} parent=0
    _
  %s6 = ssub.s32 1, %s4
  %s7 = scalar_select 0, %s6, %s4
  $region1: #{tpu_custom_call.1} parent=0
    #allocation2 [shape = 'u8[8192]{0}', space=vmem, size = 0x2000, scoped, tag = 'input window, operand 0, single buffered']
    #allocation3 [shape = 's32[1]{0}', space=sflag, size = 0x4, scoped, tag = 'scoped memory for tpu_custom_call.1']
    #allocation4 [shape = 's32[1]{0}', space=sflag, size = 0x4, scoped, tag = 'scoped memory for tpu_custom_call.1']
    #allocation5 [shape = 'u8[8192]{0}', space=vmem, size = 0x2000, scoped, tag = 'input window, operand 1, single buffered']
    #allocation6 [shape = 's32[1]{0}', space=sflag, size = 0x4, scoped, tag = 'scoped memory for tpu_custom_call.1']
    #allocation7 [shape = 'u8[8192]{0}', space=vmem, size = 0x2000, scoped, tag = 'input window, operand 2, single buffered']
    #allocation8 [shape = 'u8[16384]{0}', space=vmem, size = 0x4000, scoped, tag = 'output window, operand 0, single buffered']
    %8 = vsyncpa [#allocation3], 0
    %9 = vsyncpa [#allocation6], 0
    %10 = vsyncpa [#allocation4], 0
    // Predicated region
    $region2: #{tpu_custom_call.1} parent=1 // pred_check
      _
    $region3: #{tpu_custom_call.1} parent=1 // pred_check_branch
      %12 = sbr.rel (0) target = $region5
    $region4: #{tpu_custom_call.1} parent=1 // pred_region
      %s14 = ssub.s32 256, 256
      %15 = vsyncadd [#allocation3], %s14
      %s16 = sshll.u32 [#allocation2], 4
      %s17 = int_to_ptr.vmem [resolvable:$true] %s16
      %22 = dma.hbm_to_vmem [thread:$0]  %s0, 256, %s17, [#allocation3], 64, 64, 4
    $region5: #{tpu_custom_call.1} parent=1 // pred_fallthru
      _
    // Predicated region
    $region6: #{tpu_custom_call.1} parent=1 // pred_check
      _
    $region7: #{tpu_custom_call.1} parent=1 // pred_check_branch
      %24 = sbr.rel (0) target = $region9
    $region8: #{tpu_custom_call.1} parent=1 // pred_region
      %s26 = ssub.s32 256, 256
      %27 = vsyncadd [#allocation6], %s26
      %s28 = sshll.u32 [#allocation5], 4
      %s29 = int_to_ptr.vmem [resolvable:$true] %s28
      %34 = dma.hbm_to_vmem [thread:$0]  %s1, 256, %s29, [#allocation6], 64, 64, 4
    $region9: #{tpu_custom_call.1} parent=1 // pred_fallthru
      _
    // Predicated region
    $region10: #{tpu_custom_call.1} parent=1 // pred_check
      _
    $region11: #{tpu_custom_call.1} parent=1 // pred_check_branch
      %36 = sbr.rel (0) target = $region13
    $region12: #{tpu_custom_call.1} parent=1 // pred_region
      %s38 = ssub.s32 256, 256
      %39 = vsyncadd [#allocation6], %s38
      %s40 = sshll.u32 [#allocation7], 4
      %s41 = int_to_ptr.vmem [resolvable:$true] %s40
      %46 = dma.hbm_to_vmem [thread:$0]  %s2, 256, %s41, [#allocation6], 64, 64, 4
    $region13: #{tpu_custom_call.1} parent=1 // pred_fallthru
      _
    // Predicated region
    $region14: #{tpu_custom_call.1} parent=1 // pred_check
      _
    $region15: #{tpu_custom_call.1} parent=1 // pred_check_branch
      %48 = sbr.rel (0) target = $region17
    $region16: #{tpu_custom_call.1} parent=1 // pred_region
      %49 = dma.done [#allocation3], 256
    $region17: #{tpu_custom_call.1} parent=1 // pred_fallthru
      _
    // Predicated region
    $region18: #{tpu_custom_call.1} parent=1 // pred_check
      _
    $region19: #{tpu_custom_call.1} parent=1 // pred_check_branch
      %51 = sbr.rel (0) target = $region21
    $region20: #{tpu_custom_call.1} parent=1 // pred_region
      %52 = dma.done [#allocation6], 256
    $region21: #{tpu_custom_call.1} parent=1 // pred_fallthru
      _
    // Predicated region
    $region22: #{tpu_custom_call.1} parent=1 // pred_check
      _
    $region23: #{tpu_custom_call.1} parent=1 // pred_check_branch
      %54 = sbr.rel (0) target = $region25
    $region24: #{tpu_custom_call.1} parent=1 // pred_region
      %55 = dma.done [#allocation6], 256
    $region25: #{tpu_custom_call.1} parent=1 // pred_fallthru
      _
    %v57 = vld [vmem:[#allocation2] sm:$0xf]
    %v58 = vld [vmem:[#allocation2 + $0x4] sm:$0xf]
    %v59 = vld [vmem:[#allocation2 + $0x8] sm:$0xf]
    %v60 = vld [vmem:[#allocation2 + $0xc] sm:$0xf]
    %v61 = vld [vmem:[#allocation5] sm:$0xf]
    %v62 = vld [vmem:[#allocation5 + $0x4] sm:$0xf]
    %v63 = vld [vmem:[#allocation5 + $0x8] sm:$0xf]
    %v64 = vld [vmem:[#allocation5 + $0xc] sm:$0xf]
    %v65 = vld [vmem:[#allocation7] sm:$0xf]
    %v66 = vld [vmem:[#allocation7 + $0x4] sm:$0xf]
    %v67 = vld [vmem:[#allocation7 + $0x8] sm:$0xf]
    %v68 = vld [vmem:[#allocation7 + $0xc] sm:$0xf]
    %vm69 = vcmask 64512
    %v71 = vsel %vm69, %v57, 0
    %v74 = vsel %vm69, %v61, 0
    %76 = vmatprep.subr.bf16.mxu0 0
    %77 = vmatpush1.bf16.xpose.msra.mxu0 %v74
    %78 = vmatprep.subr.bf16.mxu0 0
    %79 = vmatpush1.bf16.xpose.msra.mxu0 0
    %80 = vmatprep.subr.bf16.mxu0 0
    %81 = vmatpush1.bf16.xpose.msra.mxu0 0
    %82 = vmatprep.subr.bf16.mxu0 0
    %83 = vmatpush1.bf16.xpose.msra.mxu0 0
    %84 = vmatprep.subr.bf16.mxu0 0
    %85 = vmatpush1.bf16.xpose.msra.mxu0 0
    %86 = vmatprep.subr.bf16.mxu0 0
    %87 = vmatpush1.bf16.xpose.msra.mxu0 0
    %88 = vmatprep.subr.bf16.mxu0 0
    %89 = vmatpush1.bf16.xpose.msra.mxu0 0
    %90 = vmatprep.subr.bf16.mxu0 0
    %91 = vmatpush1.bf16.xpose.msra.mxu0 0
    %92 = vmatprep.subr.bf16.mxu0 0
    %93 = vmatpush1.bf16.xpose.msra.mxu0 0
    %94 = vmatprep.subr.bf16.mxu0 0
    %95 = vmatpush1.bf16.xpose.msra.mxu0 0
    %96 = vmatprep.subr.bf16.mxu0 0
    %97 = vmatpush1.bf16.xpose.msra.mxu0 0
    %98 = vmatprep.subr.bf16.mxu0 0
    %99 = vmatpush1.bf16.xpose.msra.mxu0 0
    %100 = vmatprep.subr.bf16.mxu0 0
    %101 = vmatpush1.bf16.xpose.msra.mxu0 0
    %102 = vmatprep.subr.bf16.mxu0 0
    %103 = vmatpush1.bf16.xpose.msra.mxu0 0
    %104 = vmatprep.subr.bf16.mxu0 0
    %105 = vmatpush1.bf16.xpose.msra.mxu0 0
    %106 = vmatprep.subr.bf16.mxu0 0
    %107 = vmatpush1.bf16.xpose.msra.mxu0 0
    %108 = vmatprep.mubr.bf16.mxu0 0
    %109 = vmatmul.mubr.bf16.gmra.mrb[0].mxu0 %v71
    %v110 = vpop.f32.mrb[0].mxu0
    %v111 = vadd.f32 0.0, %v110
    %v112 = vpop.f32.mrb[0].mxu0
    %v113 = vpop.f32.mrb[0].mxu0
    %v114 = vpop.f32.mrb[0].mxu0
    %115 = vdwg.mxu0
    %v117 = vsel %vm69, %v58, 0
    %v120 = vsel %vm69, %v62, 0
    %122 = vmatprep.subr.bf16.mxu0 0
    %123 = vmatpush1.bf16.xpose.msra.mxu0 %v120
    %124 = vmatprep.subr.bf16.mxu0 0
    %125 = vmatpush1.bf16.xpose.msra.mxu0 0
    %126 = vmatprep.subr.bf16.mxu0 0
    %127 = vmatpush1.bf16.xpose.msra.mxu0 0
    %128 = vmatprep.subr.bf16.mxu0 0
    %129 = vmatpush1.bf16.xpose.msra.mxu0 0
    %130 = vmatprep.subr.bf16.mxu0 0
    %131 = vmatpush1.bf16.xpose.msra.mxu0 0
    %132 = vmatprep.subr.bf16.mxu0 0
    %133 = vmatpush1.bf16.xpose.msra.mxu0 0
    %134 = vmatprep.subr.bf16.mxu0 0
    %135 = vmatpush1.bf16.xpose.msra.mxu0 0
    %136 = vmatprep.subr.bf16.mxu0 0
    %137 = vmatpush1.bf16.xpose.msra.mxu0 0
    %138 = vmatprep.subr.bf16.mxu0 0
    %139 = vmatpush1.bf16.xpose.msra.mxu0 0
    %140 = vmatprep.subr.bf16.mxu0 0
    %141 = vmatpush1.bf16.xpose.msra.mxu0 0
    %142 = vmatprep.subr.bf16.mxu0 0
    %143 = vmatpush1.bf16.xpose.msra.mxu0 0
    %144 = vmatprep.subr.bf16.mxu0 0
    %145 = vmatpush1.bf16.xpose.msra.mxu0 0
    %146 = vmatprep.subr.bf16.mxu0 0
    %147 = vmatpush1.bf16.xpose.msra.mxu0 0
    %148 = vmatprep.subr.bf16.mxu0 0
    %149 = vmatpush1.bf16.xpose.msra.mxu0 0
    %150 = vmatprep.subr.bf16.mxu0 0
    %151 = vmatpush1.bf16.xpose.msra.mxu0 0
    %152 = vmatprep.subr.bf16.mxu0 0
    %153 = vmatpush1.bf16.xpose.msra.mxu0 0
    %154 = vmatprep.mubr.bf16.mxu0 0
    %155 = vmatmul.mubr.bf16.gmra.mrb[0].mxu0 %v117
    %v156 = vpop.f32.mrb[0].mxu0
    %v157 = vadd.f32 0.0, %v156
    %v158 = vpop.f32.mrb[0].mxu0
    %v159 = vpop.f32.mrb[0].mxu0
    %v160 = vpop.f32.mrb[0].mxu0
    %161 = vdwg.mxu0
    %v163 = vsel %vm69, %v59, 0
    %v166 = vsel %vm69, %v63, 0
    %168 = vmatprep.subr.bf16.mxu0 0
    %169 = vmatpush1.bf16.xpose.msra.mxu0 %v166
    %170 = vmatprep.subr.bf16.mxu0 0
    %171 = vmatpush1.bf16.xpose.msra.mxu0 0
    %172 = vmatprep.subr.bf16.mxu0 0
    %173 = vmatpush1.bf16.xpose.msra.mxu0 0
    %174 = vmatprep.subr.bf16.mxu0 0
    %175 = vmatpush1.bf16.xpose.msra.mxu0 0
    %176 = vmatprep.subr.bf16.mxu0 0
    %177 = vmatpush1.bf16.xpose.msra.mxu0 0
    %178 = vmatprep.subr.bf16.mxu0 0
    %179 = vmatpush1.bf16.xpose.msra.mxu0 0
    %180 = vmatprep.subr.bf16.mxu0 0
    %181 = vmatpush1.bf16.xpose.msra.mxu0 0
    %182 = vmatprep.subr.bf16.mxu0 0
    %183 = vmatpush1.bf16.xpose.msra.mxu0 0
    %184 = vmatprep.subr.bf16.mxu0 0
    %185 = vmatpush1.bf16.xpose.msra.mxu0 0
    %186 = vmatprep.subr.bf16.mxu0 0
    %187 = vmatpush1.bf16.xpose.msra.mxu0 0
    %188 = vmatprep.subr.bf16.mxu0 0
    %189 = vmatpush1.bf16.xpose.msra.mxu0 0
    %190 = vmatprep.subr.bf16.mxu0 0
    %191 = vmatpush1.bf16.xpose.msra.mxu0 0
    %192 = vmatprep.subr.bf16.mxu0 0
    %193 = vmatpush1.bf16.xpose.msra.mxu0 0
    %194 = vmatprep.subr.bf16.mxu0 0
    %195 = vmatpush1.bf16.xpose.msra.mxu0 0
    %196 = vmatprep.subr.bf16.mxu0 0
    %197 = vmatpush1.bf16.xpose.msra.mxu0 0
    %198 = vmatprep.subr.bf16.mxu0 0
    %199 = vmatpush1.bf16.xpose.msra.mxu0 0
    %200 = vmatprep.mubr.bf16.mxu0 0
    %201 = vmatmul.mubr.bf16.gmra.mrb[0].mxu0 %v163
    %v202 = vpop.f32.mrb[0].mxu0
    %v203 = vadd.f32 0.0, %v202
    %v204 = vpop.f32.mrb[0].mxu0
    %v205 = vpop.f32.mrb[0].mxu0
    %v206 = vpop.f32.mrb[0].mxu0
    %207 = vdwg.mxu0
    %v209 = vsel %vm69, %v60, 0
    %v212 = vsel %vm69, %v64, 0
    %214 = vmatprep.subr.bf16.mxu0 0
    %215 = vmatpush1.bf16.xpose.msra.mxu0 %v212
    %216 = vmatprep.subr.bf16.mxu0 0
    %217 = vmatpush1.bf16.xpose.msra.mxu0 0
    %218 = vmatprep.subr.bf16.mxu0 0
    %219 = vmatpush1.bf16.xpose.msra.mxu0 0
    %220 = vmatprep.subr.bf16.mxu0 0
    %221 = vmatpush1.bf16.xpose.msra.mxu0 0
    %222 = vmatprep.subr.bf16.mxu0 0
    %223 = vmatpush1.bf16.xpose.msra.mxu0 0
    %224 = vmatprep.subr.bf16.mxu0 0
    %225 = vmatpush1.bf16.xpose.msra.mxu0 0
    %226 = vmatprep.subr.bf16.mxu0 0
    %227 = vmatpush1.bf16.xpose.msra.mxu0 0
    %228 = vmatprep.subr.bf16.mxu0 0
    %229 = vmatpush1.bf16.xpose.msra.mxu0 0
    %230 = vmatprep.subr.bf16.mxu0 0
    %231 = vmatpush1.bf16.xpose.msra.mxu0 0
    %232 = vmatprep.subr.bf16.mxu0 0
    %233 = vmatpush1.bf16.xpose.msra.mxu0 0
    %234 = vmatprep.subr.bf16.mxu0 0
    %235 = vmatpush1.bf16.xpose.msra.mxu0 0
    %236 = vmatprep.subr.bf16.mxu0 0
    %237 = vmatpush1.bf16.xpose.msra.mxu0 0
    %238 = vmatprep.subr.bf16.mxu0 0
    %239 = vmatpush1.bf16.xpose.msra.mxu0 0
    %240 = vmatprep.subr.bf16.mxu0 0
    %241 = vmatpush1.bf16.xpose.msra.mxu0 0
    %242 = vmatprep.subr.bf16.mxu0 0
    %243 = vmatpush1.bf16.xpose.msra.mxu0 0
    %244 = vmatprep.subr.bf16.mxu0 0
    %245 = vmatpush1.bf16.xpose.msra.mxu0 0
    %246 = vmatprep.mubr.bf16.mxu0 0
    %247 = vmatmul.mubr.bf16.gmra.mrb[0].mxu0 %v209
    %v248 = vpop.f32.mrb[0].mxu0
    %v249 = vadd.f32 0.0, %v248
    %v250 = vpop.f32.mrb[0].mxu0
    %v251 = vpop.f32.mrb[0].mxu0
    %v252 = vpop.f32.mrb[0].mxu0
    %253 = vdwg.mxu0
    %v254 = vsel %vm69, %v111, -inf
    %255 = vmax.xlane.f32.xlu0 %v254
    %v256 = vpop.xlane.xlu0 %255
    %v257 = vsel %vm69, %v157, -inf
    %258 = vmax.xlane.f32.xlu0 %v257
    %v259 = vpop.xlane.xlu0 %258
    %v260 = vsel %vm69, %v203, -inf
    %261 = vmax.xlane.f32.xlu0 %v260
    %v262 = vpop.xlane.xlu0 %261
    %v263 = vsel %vm69, %v249, -inf
    %264 = vmax.xlane.f32.xlu0 %v263
    %v265 = vpop.xlane.xlu0 %264
    %v266 = vsub.f32 %v111, %v256
    %v267 = vsub.f32 %v157, %v259
    %v268 = vsub.f32 %v203, %v262
    %v269 = vsub.f32 %v249, %v265
    %v270 = vmul.f32 %v266, 1.442695
    %v271 = vpow.pop %v270
    %v272 = vmul.f32 %v267, 1.442695
    %v273 = vpow.pop %v272
    %v274 = vmul.f32 %v268, 1.442695
    %v275 = vpow.pop %v274
    %v276 = vmul.f32 %v269, 1.442695
    %v277 = vpow.pop %v276
    %v278 = vsel %vm69, %v271, 0.0
    %279 = vadd.xlane.f32.xlu0 %v278
    %v280 = vpop.xlane.xlu0 %279
    %v281 = vsel %vm69, %v273, 0.0
    %282 = vadd.xlane.f32.xlu0 %v281
    %v283 = vpop.xlane.xlu0 %282
    %v284 = vsel %vm69, %v275, 0.0
    %285 = vadd.xlane.f32.xlu0 %v284
    %v286 = vpop.xlane.xlu0 %285
    %v287 = vsel %vm69, %v277, 0.0
    %288 = vadd.xlane.f32.xlu0 %v287
    %v289 = vpop.xlane.xlu0 %288
    %v290 = vpack.c.bf16 %v271, %v271
    %v291 = vpack.c.bf16 %v273, %v273
    %v292 = vpack.c.bf16 %v275, %v275
    %v293 = vpack.c.bf16 %v277, %v277
    %v295 = vsel %vm69, %v290, 0
    %vm297 = vcmask 1043456
    %v299 = vsel %vm297, %v65, 0
    %301 = vmatprep.subr.bf16.mxu0 0
    %302 = vmatpush1.bf16.msra.mxu0 %v299
    %303 = vmatprep.subr.bf16.mxu0 0
    %304 = vmatpush1.bf16.msra.mxu0 0
    %305 = vmatprep.subr.bf16.mxu0 0
    %306 = vmatpush1.bf16.msra.mxu0 0
    %307 = vmatprep.subr.bf16.mxu0 0
    %308 = vmatpush1.bf16.msra.mxu0 0
    %309 = vmatprep.subr.bf16.mxu0 0
    %310 = vmatpush1.bf16.msra.mxu0 0
    %311 = vmatprep.subr.bf16.mxu0 0
    %312 = vmatpush1.bf16.msra.mxu0 0
    %313 = vmatprep.subr.bf16.mxu0 0
    %314 = vmatpush1.bf16.msra.mxu0 0
    %315 = vmatprep.subr.bf16.mxu0 0
    %316 = vmatpush1.bf16.msra.mxu0 0
    %317 = vmatprep.subr.bf16.mxu0 0
    %318 = vmatpush1.bf16.msra.mxu0 0
    %319 = vmatprep.subr.bf16.mxu0 0
    %320 = vmatpush1.bf16.msra.mxu0 0
    %321 = vmatprep.subr.bf16.mxu0 0
    %322 = vmatpush1.bf16.msra.mxu0 0
    %323 = vmatprep.subr.bf16.mxu0 0
    %324 = vmatpush1.bf16.msra.mxu0 0
    %325 = vmatprep.subr.bf16.mxu0 0
    %326 = vmatpush1.bf16.msra.mxu0 0
    %327 = vmatprep.subr.bf16.mxu0 0
    %328 = vmatpush1.bf16.msra.mxu0 0
    %329 = vmatprep.subr.bf16.mxu0 0
    %330 = vmatpush1.bf16.msra.mxu0 0
    %331 = vmatprep.subr.bf16.mxu0 0
    %332 = vmatpush1.bf16.msra.mxu0 0
    %333 = vmatprep.mubr.bf16.mxu0 0
    %334 = vmatmul.mubr.bf16.gmra.mrb[0].mxu0 %v295
    %v335 = vpop.f32.mrb[0].mxu0
    %v336 = vadd.f32 0.0, %v335
    %v337 = vpop.f32.mrb[0].mxu0
    %v338 = vpop.f32.mrb[0].mxu0
    %v339 = vpop.f32.mrb[0].mxu0
    %340 = vdwg.mxu0
    %v342 = vsel %vm69, %v291, 0
    %v345 = vsel %vm297, %v66, 0
    %347 = vmatprep.subr.bf16.mxu0 0
    %348 = vmatpush1.bf16.msra.mxu0 %v345
    %349 = vmatprep.subr.bf16.mxu0 0
    %350 = vmatpush1.bf16.msra.mxu0 0
    %351 = vmatprep.subr.bf16.mxu0 0
    %352 = vmatpush1.bf16.msra.mxu0 0
    %353 = vmatprep.subr.bf16.mxu0 0
    %354 = vmatpush1.bf16.msra.mxu0 0
    %355 = vmatprep.subr.bf16.mxu0 0
    %356 = vmatpush1.bf16.msra.mxu0 0
    %357 = vmatprep.subr.bf16.mxu0 0
    %358 = vmatpush1.bf16.msra.mxu0 0
    %359 = vmatprep.subr.bf16.mxu0 0
    %360 = vmatpush1.bf16.msra.mxu0 0
    %361 = vmatprep.subr.bf16.mxu0 0
    %362 = vmatpush1.bf16.msra.mxu0 0
    %363 = vmatprep.subr.bf16.mxu0 0
    %364 = vmatpush1.bf16.msra.mxu0 0
    %365 = vmatprep.subr.bf16.mxu0 0
    %366 = vmatpush1.bf16.msra.mxu0 0
    %367 = vmatprep.subr.bf16.mxu0 0
    %368 = vmatpush1.bf16.msra.mxu0 0
    %369 = vmatprep.subr.bf16.mxu0 0
    %370 = vmatpush1.bf16.msra.mxu0 0
    %371 = vmatprep.subr.bf16.mxu0 0
    %372 = vmatpush1.bf16.msra.mxu0 0
    %373 = vmatprep.subr.bf16.mxu0 0
    %374 = vmatpush1.bf16.msra.mxu0 0
    %375 = vmatprep.subr.bf16.mxu0 0
    %376 = vmatpush1.bf16.msra.mxu0 0
    %377 = vmatprep.subr.bf16.mxu0 0
    %378 = vmatpush1.bf16.msra.mxu0 0
    %379 = vmatprep.mubr.bf16.mxu0 0
    %380 = vmatmul.mubr.bf16.gmra.mrb[0].mxu0 %v342
    %v381 = vpop.f32.mrb[0].mxu0
    %v382 = vadd.f32 0.0, %v381
    %v383 = vpop.f32.mrb[0].mxu0
    %v384 = vpop.f32.mrb[0].mxu0
    %v385 = vpop.f32.mrb[0].mxu0
    %386 = vdwg.mxu0
    %v388 = vsel %vm69, %v292, 0
    %v391 = vsel %vm297, %v67, 0
    %393 = vmatprep.subr.bf16.mxu0 0
    %394 = vmatpush1.bf16.msra.mxu0 %v391
    %395 = vmatprep.subr.bf16.mxu0 0
    %396 = vmatpush1.bf16.msra.mxu0 0
    %397 = vmatprep.subr.bf16.mxu0 0
    %398 = vmatpush1.bf16.msra.mxu0 0
    %399 = vmatprep.subr.bf16.mxu0 0
    %400 = vmatpush1.bf16.msra.mxu0 0
    %401 = vmatprep.subr.bf16.mxu0 0
    %402 = vmatpush1.bf16.msra.mxu0 0
    %403 = vmatprep.subr.bf16.mxu0 0
    %404 = vmatpush1.bf16.msra.mxu0 0
    %405 = vmatprep.subr.bf16.mxu0 0
    %406 = vmatpush1.bf16.msra.mxu0 0
    %407 = vmatprep.subr.bf16.mxu0 0
    %408 = vmatpush1.bf16.msra.mxu0 0
    %409 = vmatprep.subr.bf16.mxu0 0
    %410 = vmatpush1.bf16.msra.mxu0 0
    %411 = vmatprep.subr.bf16.mxu0 0
    %412 = vmatpush1.bf16.msra.mxu0 0
    %413 = vmatprep.subr.bf16.mxu0 0
    %414 = vmatpush1.bf16.msra.mxu0 0
    %415 = vmatprep.subr.bf16.mxu0 0
    %416 = vmatpush1.bf16.msra.mxu0 0
    %417 = vmatprep.subr.bf16.mxu0 0
    %418 = vmatpush1.bf16.msra.mxu0 0
    %419 = vmatprep.subr.bf16.mxu0 0
    %420 = vmatpush1.bf16.msra.mxu0 0
    %421 = vmatprep.subr.bf16.mxu0 0
    %422 = vmatpush1.bf16.msra.mxu0 0
    %423 = vmatprep.subr.bf16.mxu0 0
    %424 = vmatpush1.bf16.msra.mxu0 0
    %425 = vmatprep.mubr.bf16.mxu0 0
    %426 = vmatmul.mubr.bf16.gmra.mrb[0].mxu0 %v388
    %v427 = vpop.f32.mrb[0].mxu0
    %v428 = vadd.f32 0.0, %v427
    %v429 = vpop.f32.mrb[0].mxu0
    %v430 = vpop.f32.mrb[0].mxu0
    %v431 = vpop.f32.mrb[0].mxu0
    %432 = vdwg.mxu0
    %v434 = vsel %vm69, %v293, 0
    %v437 = vsel %vm297, %v68, 0
    %439 = vmatprep.subr.bf16.mxu0 0
    %440 = vmatpush1.bf16.msra.mxu0 %v437
    %441 = vmatprep.subr.bf16.mxu0 0
    %442 = vmatpush1.bf16.msra.mxu0 0
    %443 = vmatprep.subr.bf16.mxu0 0
    %444 = vmatpush1.bf16.msra.mxu0 0
    %445 = vmatprep.subr.bf16.mxu0 0
    %446 = vmatpush1.bf16.msra.mxu0 0
    %447 = vmatprep.subr.bf16.mxu0 0
    %448 = vmatpush1.bf16.msra.mxu0 0
    %449 = vmatprep.subr.bf16.mxu0 0
    %450 = vmatpush1.bf16.msra.mxu0 0
    %451 = vmatprep.subr.bf16.mxu0 0
    %452 = vmatpush1.bf16.msra.mxu0 0
    %453 = vmatprep.subr.bf16.mxu0 0
    %454 = vmatpush1.bf16.msra.mxu0 0
    %455 = vmatprep.subr.bf16.mxu0 0
    %456 = vmatpush1.bf16.msra.mxu0 0
    %457 = vmatprep.subr.bf16.mxu0 0
    %458 = vmatpush1.bf16.msra.mxu0 0
    %459 = vmatprep.subr.bf16.mxu0 0
    %460 = vmatpush1.bf16.msra.mxu0 0
    %461 = vmatprep.subr.bf16.mxu0 0
    %462 = vmatpush1.bf16.msra.mxu0 0
    %463 = vmatprep.subr.bf16.mxu0 0
    %464 = vmatpush1.bf16.msra.mxu0 0
    %465 = vmatprep.subr.bf16.mxu0 0
    %466 = vmatpush1.bf16.msra.mxu0 0
    %467 = vmatprep.subr.bf16.mxu0 0
    %468 = vmatpush1.bf16.msra.mxu0 0
    %469 = vmatprep.subr.bf16.mxu0 0
    %470 = vmatpush1.bf16.msra.mxu0 0
    %471 = vmatprep.mubr.bf16.mxu0 0
    %472 = vmatmul.mubr.bf16.gmra.mrb[0].mxu0 %v434
    %v473 = vpop.f32.mrb[0].mxu0
    %v474 = vadd.f32 0.0, %v473
    %v475 = vpop.f32.mrb[0].mxu0
    %v476 = vpop.f32.mrb[0].mxu0
    %v477 = vpop.f32.mrb[0].mxu0
    %478 = vdwg.mxu0
    %v479 = vrcp.pop %v280
    %v480 = vrcp.pop %v283
    %v481 = vrcp.pop %v286
    %v482 = vrcp.pop %v289
    %v483 = vmul.f32 %v336, %v479
    %v484 = vmul.f32 %v382, %v480
    %v485 = vmul.f32 %v428, %v481
    %v486 = vmul.f32 %v474, %v482
    %487 = vst.msk [vmem:[#allocation8] sm:$0xff] %vm69, %v483
    %488 = vst.msk [vmem:[#allocation8 + $0x8] sm:$0xff] %vm69, %v484
    %489 = vst.msk [vmem:[#allocation8 + $0x10] sm:$0xff] %vm69, %v485
    %490 = vst.msk [vmem:[#allocation8 + $0x18] sm:$0xff] %vm69, %v486
    // Predicated region
    $region26: #{tpu_custom_call.1} parent=1 // pred_check
      _
    $region27: #{tpu_custom_call.1} parent=1 // pred_check_branch
      %492 = sbr.rel (0) target = $region29
    $region28: #{tpu_custom_call.1} parent=1 // pred_region
      %s494 = ssub.s32 512, 512
      %495 = vsyncadd [#allocation4], %s494
      %s496 = sshll.u32 [#allocation8], 4
      %s497 = int_to_ptr.vmem [resolvable:$true] %s496
      %502 = dma.vmem_to_hbm [thread:$0]  %s497, 512, %s3, [#allocation4], 128, 128, 8
    $region29: #{tpu_custom_call.1} parent=1 // pred_fallthru
      _
    // Predicated region
    $region30: #{tpu_custom_call.1} parent=1 // pred_check
      _
    $region31: #{tpu_custom_call.1} parent=1 // pred_check_branch
      %504 = sbr.rel (0) target = $region33
    $region32: #{tpu_custom_call.1} parent=1 // pred_region
      %505 = dma.done [#allocation4], 512
    $region33: #{tpu_custom_call.1} parent=1 // pred_fallthru
      _
    %506 = vsyncpa [#allocation3], 1
    %507 = vsyncpa [#allocation6], 1
    %508 = vsyncpa [#allocation4], 1

</llo_original>
